<compile_context>
chip_gen: v6e
topology: v6e:2x2x1
jax: 0.10.0
libtpu: 0.0.40
codegen_flags: <defaults>
</compile_context>

<pallas_src>
import jax
import jax.numpy as jnp
from jax.experimental import pallas as pl
from jax.experimental.pallas import tpu as pltpu


def mlp_kernel(x_ref, w1_ref, b1_ref, w2_ref, b2_ref, o_ref):
    # Cast the f32 x tile to bf16 in-kernel (single HBM pass over x).
    x = x_ref[...].astype(jnp.bfloat16)
    # fc1: (TB, in_dim) @ (in_dim, 32) on the MXU, f32 accumulation.
    h = jnp.dot(x, w1_ref[...], preferred_element_type=jnp.float32)
    h = jnp.maximum(h + b1_ref[...], 0.0)                      # bias + ReLU (VPU)
    # fc2: (TB, 32) @ (32, 2), bf16 operands, f32 accumulation.
    o = jnp.dot(h.astype(jnp.bfloat16), w2_ref[...],
                preferred_element_type=jnp.float32)
    o_ref[...] = (o + b2_ref[...]).astype(o_ref.dtype)


def _round_up(a: int, m: int) -> int:
    return ((a + m - 1) // m) * m


def mlp_forward(x, w1, b1, w2, b2, *, tile_b: int = 16384):
    """Fused Linear->ReLU->Linear forward. Returns f32 (batch, out_dim)."""
    batch, in_dim = x.shape
    hidden = w1.shape[1]
    out_dim = w2.shape[1]

    # x stays f32 (cast to bf16 inside the kernel); weights bf16 (tiny, loaded
    # once); biases f32.
    x_f = x.astype(jnp.float32)
    w1_lp = w1.astype(jnp.bfloat16)
    w2_lp = w2.astype(jnp.bfloat16)
    b1_f = b1.astype(jnp.float32).reshape(1, hidden)
    b2_f = b2.astype(jnp.float32).reshape(1, out_dim)

    # Shrink the tile for small batches (multiple of 16 for clean sublane /
    # bf16-packed layouts). No padding: the last grid step may be ragged and
    # Pallas masks the out-of-bounds output rows.
    tb = min(tile_b, _round_up(batch, 16))
    grid = (pl.cdiv(batch, tb),)

    cost = pl.CostEstimate(
        flops=2 * batch * (in_dim * hidden + hidden * out_dim),
        transcendentals=0,
        bytes_accessed=batch * (in_dim * 4 + out_dim * 4)
        + (in_dim * hidden + hidden * out_dim) * 2
        + (hidden + out_dim) * 4,
    )

    out = pl.pallas_call(
        mlp_kernel,
        out_shape=jax.ShapeDtypeStruct((batch, out_dim), jnp.float32),
        grid=grid,
        in_specs=[
            # x: streamed per batch tile (auto double-buffered DMA), single pass.
            pl.BlockSpec((tb, in_dim), lambda i: (i, 0)),
            # weights / biases: constant block index -> loaded once, VMEM-resident.
            pl.BlockSpec((in_dim, hidden), lambda i: (0, 0)),
            pl.BlockSpec((1, hidden), lambda i: (0, 0)),
            pl.BlockSpec((hidden, out_dim), lambda i: (0, 0)),
            pl.BlockSpec((1, out_dim), lambda i: (0, 0)),
        ],
        out_specs=pl.BlockSpec((tb, out_dim), lambda i: (i, 0)),
        compiler_params=pltpu.CompilerParams(
            # Batch tiles are independent -> shard across TensorCores on v7x.
            dimension_semantics=("parallel",),
            # tb=16384: x f32 block 8 MiB x2 + out f32 block 8 MiB x2 ~= 32 MiB.
            # 48 MiB leaves headroom and stays under v7x's 64 MiB physical VMEM.
            vmem_limit_bytes=48 * 1024 * 1024,
        ),
        cost_estimate=cost,
    )(x_f, w1_lp, b1_f, w2_lp, b2_f)

    return out


def init_params(key, in_dim, hidden=32, out_dim=2, dtype=jnp.float32):
    """Deterministic init mimicking nn.Linear's uniform(-1/sqrt(fan_in), +)."""
    k1, k2, k3, k4 = jax.random.split(key, 4)
    bound1 = 1.0 / jnp.sqrt(jnp.float32(in_dim))
    bound2 = 1.0 / jnp.sqrt(jnp.float32(hidden))
    w1 = jax.random.uniform(k1, (in_dim, hidden), dtype, -bound1, bound1)
    b1 = jax.random.uniform(k2, (1, hidden), dtype, -bound1, bound1)
    w2 = jax.random.uniform(k3, (hidden, out_dim), dtype, -bound2, bound2)
    b2 = jax.random.uniform(k4, (1, out_dim), dtype, -bound2, bound2)
    return w1, b1, w2, b2


def _reference(x, w1, b1, w2, b2):
    return jnp.maximum(x @ w1 + b1, 0.0) @ w2 + b2


if __name__ == "__main__":
    key = jax.random.PRNGKey(0)
    in_dim = 30  # credit-card-fraud feature count implied by the module
    kx, kp, kx2 = jax.random.split(key, 3)
    w1, b1, w2, b2 = init_params(kp, in_dim)

    # Small-shape check (single grid step, tile shrunk to the batch).
    batch = 8
    x = jax.random.normal(kx, (batch, in_dim), jnp.float32)
    out = mlp_forward(x, w1, b1, w2, b2)
    jax.block_until_ready(out)
    ref = _reference(x, w1, b1, w2, b2)
    assert out.shape == (batch, 2)
    # bf16 weights / bf16 in-kernel cast of x -> loosen tolerance vs f32 ref.
    assert jnp.allclose(out, ref, atol=2e-2, rtol=2e-2)

    # Multi-tile check: grid > 1 with a ragged last block (no padding path).
    batch2 = 300
    x2 = jax.random.normal(kx2, (batch2, in_dim), jnp.float32)
    out2 = mlp_forward(x2, w1, b1, w2, b2, tile_b=128)
    jax.block_until_ready(out2)
    ref2 = _reference(x2, w1, b1, w2, b2)
    assert out2.shape == (batch2, 2)
    assert jnp.allclose(out2, ref2, atol=2e-2, rtol=2e-2)

    print("KERNEL_OK")
</pallas_src>

<mosaic_0001>
module attributes {stable_mosaic.version = 11 : i64} {
  func.func @mlp_kernel(%arg0: i32, %arg1: memref<16x30xf32, #tpu.memory_space<vmem>>, %arg2: memref<30x32xbf16, #tpu.memory_space<vmem>>, %arg3: memref<1x32xf32, #tpu.memory_space<vmem>>, %arg4: memref<32x2xbf16, #tpu.memory_space<vmem>>, %arg5: memref<1x2xf32, #tpu.memory_space<vmem>>, %arg6: memref<16x2xf32, #tpu.memory_space<vmem>>) attributes {dimension_semantics = [#tpu.dimension_semantics<parallel>], iteration_bounds = array<i64: 1>, scalar_prefetch = 0 : i64, scratch_operands = 0 : i64, tpu.core_type = #tpu.core_type<tc>, window_params = [{transform_indices = @transform_0, window_bounds = array<i64: 16, 30>}, {pipeline_mode = #tpu.pipeline_mode<synchronous>, transform_indices = @transform_1, window_bounds = array<i64: 30, 32>}, {pipeline_mode = #tpu.pipeline_mode<synchronous>, transform_indices = @transform_2, window_bounds = array<i64: 1, 32>}, {pipeline_mode = #tpu.pipeline_mode<synchronous>, transform_indices = @transform_3, window_bounds = array<i64: 32, 2>}, {pipeline_mode = #tpu.pipeline_mode<synchronous>, transform_indices = @transform_4, window_bounds = array<i64: 1, 2>}, {transform_indices = @transform_5, window_bounds = array<i64: 16, 2>}]} {
    %c0 = arith.constant 0 : index
    %c0_0 = arith.constant 0 : index
    %0 = vector.load %arg1[%c0, %c0_0] : memref<16x30xf32, #tpu.memory_space<vmem>>, vector<16x30xf32>
    %1 = arith.truncf %0 : vector<16x30xf32> to vector<16x30xbf16>
    %c0_1 = arith.constant 0 : index
    %c0_2 = arith.constant 0 : index
    %2 = vector.load %arg2[%c0_1, %c0_2] : memref<30x32xbf16, #tpu.memory_space<vmem>>, vector<30x32xbf16>
    %cst = arith.constant dense<0.000000e+00> : vector<16x32xf32>
    %3 = tpu.matmul %1, %2, %cst {dimension_numbers = #tpu.dot_dimension_numbers<[1], [0], [0], [1], [0, 0, 1, 1], [], []>} : vector<16x30xbf16>, vector<30x32xbf16>, vector<16x32xf32> -> vector<16x32xf32>
    %c0_3 = arith.constant 0 : index
    %c0_4 = arith.constant 0 : index
    %4 = vector.load %arg3[%c0_3, %c0_4] : memref<1x32xf32, #tpu.memory_space<vmem>>, vector<1x32xf32>
    %5 = vector.broadcast %4 : vector<1x32xf32> to vector<16x32xf32>
    %6 = arith.addf %3, %5 : vector<16x32xf32>
    %cst_5 = arith.constant 0.000000e+00 : f32
    %7 = vector.broadcast %cst_5 : f32 to vector<16x32xf32>
    %8 = arith.maximumf %6, %7 : vector<16x32xf32>
    %9 = arith.truncf %8 : vector<16x32xf32> to vector<16x32xbf16>
    %c0_6 = arith.constant 0 : index
    %c0_7 = arith.constant 0 : index
    %10 = vector.load %arg4[%c0_6, %c0_7] : memref<32x2xbf16, #tpu.memory_space<vmem>>, vector<32x2xbf16>
    %cst_8 = arith.constant dense<0.000000e+00> : vector<16x2xf32>
    %11 = tpu.matmul %9, %10, %cst_8 {dimension_numbers = #tpu.dot_dimension_numbers<[1], [0], [0], [1], [0, 0, 1, 1], [], []>} : vector<16x32xbf16>, vector<32x2xbf16>, vector<16x2xf32> -> vector<16x2xf32>
    %c0_9 = arith.constant 0 : index
    %c0_10 = arith.constant 0 : index
    %12 = vector.load %arg5[%c0_9, %c0_10] : memref<1x2xf32, #tpu.memory_space<vmem>>, vector<1x2xf32>
    %13 = vector.broadcast %12 : vector<1x2xf32> to vector<16x2xf32>
    %14 = arith.addf %11, %13 : vector<16x2xf32>
    %c0_11 = arith.constant 0 : index
    %c0_12 = arith.constant 0 : index
    %15 = vector.load %arg6[%c0_11, %c0_12] : memref<16x2xf32, #tpu.memory_space<vmem>>, vector<16x2xf32>
    tpu.vector_store %arg6[%c0_11, %c0_12], %14 {strides = array<i32>} : memref<16x2xf32, #tpu.memory_space<vmem>>, vector<16x2xf32>,
    return
  }
  func.func @transform_0(%arg0: i32) -> (i32, i32) {
    %c0_i32 = arith.constant 0 : i32
    %c0_i32_0 = arith.constant 0 : i32
    return %arg0, %c0_i32 : i32, i32
  }
  func.func @transform_1(%arg0: i32) -> (i32, i32) {
    %c0_i32 = arith.constant 0 : i32
    %c0_i32_0 = arith.constant 0 : i32
    %c0_i32_1 = arith.constant 0 : i32
    return %c0_i32, %c0_i32_0 : i32, i32
  }
  func.func @transform_2(%arg0: i32) -> (i32, i32) {
    %c0_i32 = arith.constant 0 : i32
    %c0_i32_0 = arith.constant 0 : i32
    %c0_i32_1 = arith.constant 0 : i32
    return %c0_i32, %c0_i32_0 : i32, i32
  }
  func.func @transform_3(%arg0: i32) -> (i32, i32) {
    %c0_i32 = arith.constant 0 : i32
    %c0_i32_0 = arith.constant 0 : i32
    %c0_i32_1 = arith.constant 0 : i32
    return %c0_i32, %c0_i32_0 : i32, i32
  }
  func.func @transform_4(%arg0: i32) -> (i32, i32) {
    %c0_i32 = arith.constant 0 : i32
    %c0_i32_0 = arith.constant 0 : i32
    %c0_i32_1 = arith.constant 0 : i32
    return %c0_i32, %c0_i32_0 : i32, i32
  }
  func.func @transform_5(%arg0: i32) -> (i32, i32) {
    %c0_i32 = arith.constant 0 : i32
    %c0_i32_0 = arith.constant 0 : i32
    return %arg0, %c0_i32 : i32, i32
  }
}

</mosaic_0001>

<llo_original>
// kernel: tpu_custom_call.1
$region0: #{tpu_custom_call.1}
  #allocation0 [shape = 'u32[]', space=smem, size = 0x4, offset = 0x4, fixed_abs, tag = 'smem constant byte address 0x4 - core index']
  #allocation1 [shape = 'u32[144,128]{1,0:T(1,128)}', space=vmem, size = 0x12000, scoped, tag = 'internal scratch']
  %s0 = inlined_call_operand.hbm [shape: f32[8,30], index: 0, kind: input, shape index: {}]
  %s1 = inlined_call_operand.vmem [shape: bf16[30,32], index: 1, kind: input, shape index: {}]
  %s2 = inlined_call_operand.vmem [shape: f32[1,32], index: 2, kind: input, shape index: {}]
  %s3 = inlined_call_operand.vmem [shape: bf16[32,2], index: 3, kind: input, shape index: {}]
  %s4 = inlined_call_operand.vmem [shape: f32[1,2], index: 4, kind: input, shape index: {}]
  %s5 = inlined_call_operand.vmem [shape: f32[8,2], index: 5, kind: output, shape index: {}]
  %s6 = sld [smem:[#allocation0]]
  $region68: #{tpu_custom_call.1} parent=0
    _
  %s8 = ssub.s32 1, %s6
  %s9 = scalar_select 0, %s8, %s6
  $region1: #{tpu_custom_call.1} parent=0
    #allocation2 [shape = 'u8[8192]{0}', space=vmem, size = 0x2000, scoped, tag = 'input window, operand 0, single buffered']
    #allocation3 [shape = 's32[1]{0}', space=sflag, size = 0x4, scoped, tag = 'scoped memory for tpu_custom_call.1']
    #allocation4 [shape = 'u8[8192]{0}', space=vmem, size = 0x2000, scoped, tag = 'output window, operand 0, single buffered']
    %10 = vsyncpa [#allocation3], 0
    // Predicated region
    $region2: #{tpu_custom_call.1} parent=1 // pred_check
      _
    $region3: #{tpu_custom_call.1} parent=1 // pred_check_branch
      %12 = sbr.rel (0) target = $region5
    $region4: #{tpu_custom_call.1} parent=1 // pred_region
      %s14 = ssub.s32 256, 128
      %15 = vsyncadd [#allocation3], %s14
      %s16 = sshll.u32 [#allocation2], 4
      %s17 = int_to_ptr.vmem [resolvable:$true] %s16
      %22 = dma.hbm_to_vmem [thread:$0]  %s0, 128, %s17, [#allocation3], 128, 128, 8
    $region5: #{tpu_custom_call.1} parent=1 // pred_fallthru
      _
    // Predicated region
    $region6: #{tpu_custom_call.1} parent=1 // pred_check
      _
    $region7: #{tpu_custom_call.1} parent=1 // pred_check_branch
      %24 = sbr.rel (0) target = $region9
    $region8: #{tpu_custom_call.1} parent=1 // pred_region
      _
    $region9: #{tpu_custom_call.1} parent=1 // pred_fallthru
      _
    // Predicated region
    $region10: #{tpu_custom_call.1} parent=1 // pred_check
      _
    $region11: #{tpu_custom_call.1} parent=1 // pred_check_branch
      %26 = sbr.rel (0) target = $region13
    $region12: #{tpu_custom_call.1} parent=1 // pred_region
      _
    $region13: #{tpu_custom_call.1} parent=1 // pred_fallthru
      _
    // Predicated region
    $region14: #{tpu_custom_call.1} parent=1 // pred_check
      _
    $region15: #{tpu_custom_call.1} parent=1 // pred_check_branch
      %28 = sbr.rel (0) target = $region17
    $region16: #{tpu_custom_call.1} parent=1 // pred_region
      _
    $region17: #{tpu_custom_call.1} parent=1 // pred_fallthru
      _
    // Predicated region
    $region18: #{tpu_custom_call.1} parent=1 // pred_check
      _
    $region19: #{tpu_custom_call.1} parent=1 // pred_check_branch
      %30 = sbr.rel (0) target = $region21
    $region20: #{tpu_custom_call.1} parent=1 // pred_region
      _
    $region21: #{tpu_custom_call.1} parent=1 // pred_fallthru
      _
    // Predicated region
    $region22: #{tpu_custom_call.1} parent=1 // pred_check
      _
    $region23: #{tpu_custom_call.1} parent=1 // pred_check_branch
      %32 = sbr.rel (0) target = $region25
    $region24: #{tpu_custom_call.1} parent=1 // pred_region
      %33 = dma.done [#allocation3], 256
    $region25: #{tpu_custom_call.1} parent=1 // pred_fallthru
      _
    %v35 = vld [vmem:[#allocation2] sm:$0xff]
    %v36 = vld [vmem:[#allocation2 + $0x8] sm:$0xff]
    %v37 = vpack.c.bf16 %v36, %v35
    %v38 = vld [vmem:[%s1] sm:$0xf]
    %v39 = vld [vmem:[%s1 + $0x4] sm:$0xf]
    %v40 = vld [vmem:[%s1 + $0x8] sm:$0xf]
    %v41 = vld [vmem:[%s1 + $0xc] sm:$0x7]
    %v42 = vld [vmem:[%s2] sm:$0x1]
    %v44 = vlaneseq
    %v45 = vshrl.u32 %v44, 7
    %v46 = vsub.s32 0, %v45
    %v47 = vrot.slane %v42, %v46
    %v53 = vunpack.c.l.b16 %v38
    %v54 = vunpack.c.l.b16 %v39
    %v55 = vunpack.c.l.b16 %v40
    %v56 = vunpack.c.l.b16 %v41
    %v57 = vpack.c.b16 %v54, %v53
    %v58 = vpack.c.b16 %v56, %v55
    %vm60 = vcmask 244736
    %v62 = vsel %vm60, %v37, 0
    %vm64 = vcmask 1046528
    %v66 = vsel %vm64, %v58, 0
    %68 = vmatprep.subr.bf16.mxu0 0
    %69 = vmatpush1.bf16.msra.mxu0 0
    %70 = vmatprep.subr.bf16.mxu0 0
    %71 = vmatpush1.bf16.msra.mxu0 0
    %72 = vmatprep.subr.bf16.mxu0 0
    %73 = vmatpush1.bf16.msra.mxu0 0
    %74 = vmatprep.subr.bf16.mxu0 0
    %75 = vmatpush1.bf16.msra.mxu0 0
    %76 = vmatprep.subr.bf16.mxu0 0
    %77 = vmatpush1.bf16.msra.mxu0 0
    %78 = vmatprep.subr.bf16.mxu0 0
    %79 = vmatpush1.bf16.msra.mxu0 0
    %80 = vmatprep.subr.bf16.mxu0 0
    %81 = vmatpush1.bf16.msra.mxu0 %v66
    %82 = vmatprep.subr.bf16.mxu0 0
    %83 = vmatpush1.bf16.msra.mxu0 %v57
    %84 = vmatprep.subr.bf16.mxu0 0
    %85 = vmatpush2.bf16.msra.mxu0 0
    %86 = vmatprep.subr.bf16.mxu0 0
    %87 = vmatpush2.bf16.msra.mxu0 0
    %88 = vmatprep.subr.bf16.mxu0 0
    %89 = vmatpush2.bf16.msra.mxu0 0
    %90 = vmatprep.subr.bf16.mxu0 0
    %91 = vmatpush2.bf16.msra.mxu0 0
    %92 = vmatprep.subr.bf16.mxu0 0
    %93 = vmatpush2.bf16.msra.mxu0 0
    %94 = vmatprep.subr.bf16.mxu0 0
    %95 = vmatpush2.bf16.msra.mxu0 0
    %96 = vmatprep.subr.bf16.mxu0 0
    %97 = vmatpush2.bf16.msra.mxu0 0
    %98 = vmatprep.subr.bf16.mxu0 0
    %99 = vmatpush2.bf16.msra.mxu0 0
    %100 = vmatprep.mubr.bf16.mxu0 0
    %101 = vmatmul.mubr.bf16.gmra.mxu0 %v62
    %v102 = vpop.f32.mrf.mxu0
    %v103 = vadd.f32 %v47, %v102
    %v104 = vpop.f32.mrf.mxu0
    %v105 = vpop.f32.mrf.mxu0
    %v106 = vadd.f32 %v47, %v105
    %v107 = vpop.f32.mrf.mxu0
    %108 = vdwg.mxu0
    %v109 = vmax.f32 %v103, 0.0
    %v110 = vmax.f32 %v106, 0.0
    %v111 = vpack.c.bf16 %v110, %v109
    %v112 = vld [vmem:[%s3] sm:$0xf]
    %v113 = vld [vmem:[%s3 + $0x4] sm:$0xf]
    %v114 = vld [vmem:[%s3 + $0x8] sm:$0xf]
    %v115 = vld [vmem:[%s3 + $0xc] sm:$0xf]
    %v116 = vld [vmem:[%s4] sm:$0x1]
    %v118 = vlaneseq
    %v119 = vshrl.u32 %v118, 7
    %v120 = vsub.s32 0, %v119
    %v121 = vrot.slane %v116, %v120
    %v127 = vunpack.c.l.b16 %v112
    %v128 = vunpack.c.l.b16 %v113
    %v129 = vunpack.c.l.b16 %v114
    %v130 = vunpack.c.l.b16 %v115
    %v131 = vpack.c.b16 %v128, %v127
    %v132 = vpack.c.b16 %v130, %v129
    %vm135 = vcmask 261120
    %v137 = vsel %vm135, %v111, 0
    %139 = vmatprep.subr.bf16.mxu0 0
    %140 = vmatpush1.bf16.msra.mxu0 0
    %141 = vmatprep.subr.bf16.mxu0 0
    %142 = vmatpush1.bf16.msra.mxu0 0
    %143 = vmatprep.subr.bf16.mxu0 0
    %144 = vmatpush1.bf16.msra.mxu0 0
    %145 = vmatprep.subr.bf16.mxu0 0
    %146 = vmatpush1.bf16.msra.mxu0 0
    %147 = vmatprep.subr.bf16.mxu0 0
    %148 = vmatpush1.bf16.msra.mxu0 0
    %149 = vmatprep.subr.bf16.mxu0 0
    %150 = vmatpush1.bf16.msra.mxu0 0
    %151 = vmatprep.subr.bf16.mxu0 0
    %152 = vmatpush1.bf16.msra.mxu0 %v132
    %153 = vmatprep.subr.bf16.mxu0 0
    %154 = vmatpush1.bf16.msra.mxu0 %v131
    %155 = vmatprep.subr.bf16.mxu0 0
    %156 = vmatpush2.bf16.msra.mxu0 0
    %157 = vmatprep.subr.bf16.mxu0 0
    %158 = vmatpush2.bf16.msra.mxu0 0
    %159 = vmatprep.subr.bf16.mxu0 0
    %160 = vmatpush2.bf16.msra.mxu0 0
    %161 = vmatprep.subr.bf16.mxu0 0
    %162 = vmatpush2.bf16.msra.mxu0 0
    %163 = vmatprep.subr.bf16.mxu0 0
    %164 = vmatpush2.bf16.msra.mxu0 0
    %165 = vmatprep.subr.bf16.mxu0 0
    %166 = vmatpush2.bf16.msra.mxu0 0
    %167 = vmatprep.subr.bf16.mxu0 0
    %168 = vmatpush2.bf16.msra.mxu0 0
    %169 = vmatprep.subr.bf16.mxu0 0
    %170 = vmatpush2.bf16.msra.mxu0 0
    %171 = vmatprep.mubr.bf16.mxu0 0
    %172 = vmatmul.mubr.bf16.gmra.mxu0 %v137
    %v173 = vpop.f32.mrf.mxu0
    %v174 = vadd.f32 %v121, %v173
    %v175 = vpop.f32.mrf.mxu0
    %v176 = vpop.f32.mrf.mxu0
    %v177 = vadd.f32 %v121, %v176
    %v178 = vpop.f32.mrf.mxu0
    %179 = vdwg.mxu0
    %vm180 = vcmask 15360
    %181 = vst.msk [vmem:[#allocation4] sm:$0xff] %vm180, %v174
    %182 = vst.msk [vmem:[#allocation4 + $0x8] sm:$0xff] %vm180, %v177
    // Predicated region
    $region26: #{tpu_custom_call.1} parent=1 // pred_check
      _
    $region27: #{tpu_custom_call.1} parent=1 // pred_check_branch
      %184 = sbr.rel (0) target = $region29
    $region28: #{tpu_custom_call.1} parent=1 // pred_region
      // Predicated region
      $region30: #{tpu_custom_call.1} parent=28 // pred_check
        _
      $region31: #{tpu_custom_call.1} parent=28 // pred_check_branch
        %186 = sbr.rel (0) target = $region33
      $region32: #{tpu_custom_call.1} parent=28 // pred_region
        // Predicated region
        $region34: #{tpu_custom_call.1} parent=32 // pred_check
          _
        $region35: #{tpu_custom_call.1} parent=32 // pred_check_branch
          %188 = sbr.rel (0) target = $region37
        $region36: #{tpu_custom_call.1} parent=32 // pred_region
          // Predicated region
          $region49: #{tpu_custom_call.1} parent=36 // pred_check
            _
          $region50: #{tpu_custom_call.1} parent=36 // pred_check_branch
            %204 = sbr.rel (0) target = $region52
          $region51: #{tpu_custom_call.1} parent=36 // pred_region
            loop: start=0, step=1, limit=1
            $region53: #{tpu_custom_call.1} parent=51 // loop_pre_header
              _
            $region54: #{tpu_custom_call.1} parent=51 // loop_header
              %s206 = sphi 0, %s210
              %p207 = scmp.ge.s32.totalorder %s206, 1
              %s211 = sphi [#allocation4], [#allocation4]
              %s212 = sphi %s5, %s5
            $region55: #{tpu_custom_call.1} parent=51 // loop_header_branch
              %209 = sbr.rel (%p207) target = $region59
            $region56: #{tpu_custom_call.1} parent=51 // loop_body
              %v213 = vld [vmem:[%s211] sm:$0xff]
              %214 = vst [vmem:[%s212] sm:$0xff] %v213
            $region57: #{tpu_custom_call.1} parent=51 // loop_footer
              %s210 = sadd.s32 1, %s206
            $region58: #{tpu_custom_call.1} parent=51 // loop_footer_branch
              %205 = sbr.rel target = $region54
            $region59: #{tpu_custom_call.1} parent=51 // loop_exit
              _
          $region52: #{tpu_custom_call.1} parent=36 // pred_fallthru
            _
          // Predicated region
          $region60: #{tpu_custom_call.1} parent=36 // pred_check
            _
          $region61: #{tpu_custom_call.1} parent=36 // pred_check_branch
            %216 = sbr.rel target = $region63
          $region62: #{tpu_custom_call.1} parent=36 // pred_region
            _
          $region63: #{tpu_custom_call.1} parent=36 // pred_fallthru
            _
        $region37: #{tpu_custom_call.1} parent=32 // pred_fallthru
          _
        // Predicated region
        $region38: #{tpu_custom_call.1} parent=32 // pred_check
          _
        $region39: #{tpu_custom_call.1} parent=32 // pred_check_branch
          %190 = sbr.rel target = $region41
        $region40: #{tpu_custom_call.1} parent=32 // pred_region
          %s192 = ssub.s32 256, 1
          loop: start=0, step=1, limit=1
          $region42: #{tpu_custom_call.1} parent=40 // loop_pre_header
            _
          $region43: #{tpu_custom_call.1} parent=40 // loop_header
            %s194 = sphi 0, %s198
            %p195 = scmp.ge.s32.totalorder %s194, 1
            %s199 = sphi [#allocation4], [#allocation4]
            %s200 = sphi %s5, %s5
          $region44: #{tpu_custom_call.1} parent=40 // loop_header_branch
            %197 = sbr.rel (%p195) target = $region48
          $region45: #{tpu_custom_call.1} parent=40 // loop_body
            %v201 = vld [vmem:[%s199] sm:%s192]
            %202 = vst [vmem:[%s200] sm:%s192] %v201
          $region46: #{tpu_custom_call.1} parent=40 // loop_footer
            %s198 = sadd.s32 1, %s194
          $region47: #{tpu_custom_call.1} parent=40 // loop_footer_branch
            %193 = sbr.rel target = $region43
          $region48: #{tpu_custom_call.1} parent=40 // loop_exit
            _
        $region41: #{tpu_custom_call.1} parent=32 // pred_fallthru
          _
      $region33: #{tpu_custom_call.1} parent=28 // pred_fallthru
        _
      %217 = vnop
    $region29: #{tpu_custom_call.1} parent=1 // pred_fallthru
      _
    // Predicated region
    $region64: #{tpu_custom_call.1} parent=1 // pred_check
      _
    $region65: #{tpu_custom_call.1} parent=1 // pred_check_branch
      %219 = sbr.rel (0) target = $region67
    $region66: #{tpu_custom_call.1} parent=1 // pred_region
      _
    $region67: #{tpu_custom_call.1} parent=1 // pred_fallthru
      _
    %220 = vsyncpa [#allocation3], 1

</llo_original>
